<compile_context>
chip_gen: v5e
topology: v5e:2x2
jax: 0.10.0
libtpu: 0.0.40
codegen_flags: <defaults>
</compile_context>

<pallas_src>
import functools

import jax
import jax.numpy as jnp
import numpy as np
from jax import lax
from jax.experimental import pallas as pl
from jax.experimental.pallas import tpu as pltpu

EPS = 1e-5  # nn.BatchNorm2d default eps


def wrn_block_kernel(x_ref, masks_ref, w1_ref, w2ws_ref,
                     g1_ref, b1_ref, g2_ref, b2_ref, o_ref, *, W):
    NHW = x_ref.shape[1]
    inv_nhw = 1.0 / NHW
    # Hoisted once; shared by both BN evaluations (JAX does not CSE broadcasts).
    ones_col = jnp.ones((NHW, 1), jnp.float32)

    def bn_relu(t, g, b):
        # Training-mode BN over the lane (N*H*W) axis.  Lane sums go through
        # the (otherwise idle) MXU instead of the XLU; biased variance
        # (divide by NHW) matches PyTorch's normalization.
        s1 = jnp.dot(t, ones_col, preferred_element_type=jnp.float32)        # (C,1)
        s2 = jnp.dot(t * t, ones_col, preferred_element_type=jnp.float32)    # (C,1)
        m = s1 * inv_nhw
        v = jnp.maximum(s2 * inv_nhw - m * m, 0.0)
        return jnp.maximum((t - m) * lax.rsqrt(v + EPS) * g + b, 0.0)

    def im2col(y):
        # (9*C, NHW) patch matrix for a 3x3 / stride-1 / pad-1 conv.
        # Spatial shifts are lane rotations (XLU); wrap-around lands only on
        # positions the precomputed mask zeroes, reproducing zero padding.
        taps = []
        for dy in range(3):
            for dx in range(3):
                t = dy * 3 + dx
                off = (dy - 1) * W + (dx - 1)
                if off == 0:
                    taps.append(y)                       # center tap: no mask
                else:
                    shifted = pltpu.roll(y, shift=(-off) % NHW, axis=1)
                    taps.append(shifted * masks_ref[t])  # mask pre-broadcast (C,NHW)
        return jnp.concatenate(taps, axis=0)             # 8-row aligned concat

    # ---- BN1 (batch stats) + ReLU ------------------------------------------
    y = bn_relu(x_ref[...], g1_ref[...], b1_ref[...])            # (Cpad, NHW), pad rows == 0

    # ---- conv1: single im2col MXU matmul (bf16 inputs, f32 accumulate) -----
    p1 = im2col(y)                                                # (9*Cpad, NHW) f32
    h = jnp.dot(w1_ref[...], p1.astype(jnp.bfloat16),
                preferred_element_type=jnp.float32)               # (Cout, NHW)

    # ---- BN2 (batch stats) + ReLU ------------------------------------------
    y2 = bn_relu(h, g2_ref[...], b2_ref[...])
    # TODO(synk): dropout path skipped (dropRate=0.0 in this config).
    # TODO(synk): direction='up' nearest-neighbor upsample not exercised here.

    # ---- conv2 + 1x1 shortcut fused into one matmul -------------------------
    # rhs = [im2col(y2); y], lhs = [W2_stacked | Ws^T]  (all 8-row aligned)
    p2 = jnp.concatenate([im2col(y2), y], axis=0)                 # (9*Cout+Cpad, NHW) f32
    o_ref[...] = jnp.dot(w2ws_ref[...], p2.astype(jnp.bfloat16),
                         preferred_element_type=jnp.float32)


def _full_spec(a):
    nd = a.ndim
    return pl.BlockSpec(a.shape, lambda i, _nd=nd: (0,) * _nd)


def wide_resnet_block(x, params):
    """x: (N, H, W, Cin) float32.  Returns (N, H, W, Cout) float32."""
    w1, w2, ws, g1, b1, g2, b2 = params
    N, H, W, Cin = x.shape
    Cout = w1.shape[-1]
    NHW = N * H * W
    Cpad = max(8, ((Cin + 7) // 8) * 8)       # sublane-align the input channels

    # ---- layout plumbing in XLA (outside the kernel) -------------------------
    # channels-in-sublanes, spatial-in-lanes; pad channels to Cpad with zeros.
    x_t = x.reshape(NHW, Cin).T                                   # (Cin, NHW)
    x_t = jnp.pad(x_t, ((0, Cpad - Cin), (0, 0)))                 # (Cpad, NHW)

    # Padded BN1 affine: gamma=0, beta=0 on pad rows => pad rows stay exactly 0
    # after BN+ReLU, and zero weight columns kill them in both matmuls.
    g1p = jnp.pad(g1, (0, Cpad - Cin)).reshape(Cpad, 1)
    b1p = jnp.pad(b1, (0, Cpad - Cin)).reshape(Cpad, 1)
    g2r = g2.reshape(Cout, 1)
    b2r = b2.reshape(Cout, 1)

    # zero-padding masks for the nine 3x3 taps, pre-broadcast over channels.
    s = jnp.arange(NHW)
    hh = (s // W) % H
    ww = s % W
    masks = jnp.stack([
        ((hh + dy - 1 >= 0) & (hh + dy - 1 < H) &
         (ww + dx - 1 >= 0) & (ww + dx - 1 < W)).astype(jnp.float32)
        for dy in range(3) for dx in range(3)])                   # (9, NHW)
    masks = jnp.broadcast_to(masks[:, None, :], (9, Cpad, NHW))   # (9, Cpad, NHW)

    # stacked im2col weights (bf16 at the MXU), channel-padded with zeros.
    w1_p = jnp.pad(w1, ((0, 0), (0, 0), (0, Cpad - Cin), (0, 0)))           # (3,3,Cpad,Cout)
    w1_t = jnp.transpose(w1_p.reshape(9, Cpad, Cout), (2, 0, 1)).reshape(Cout, 9 * Cpad)
    w2_t = jnp.transpose(w2.reshape(9, Cout, Cout), (2, 0, 1)).reshape(Cout, 9 * Cout)
    ws_p = jnp.pad(ws, ((0, Cpad - Cin), (0, 0)))                           # (Cpad, Cout)
    w2ws_t = jnp.concatenate([w2_t, ws_p.T], axis=1)              # (Cout, 9*Cout + Cpad)
    w1_t = w1_t.astype(jnp.bfloat16)
    w2ws_t = w2ws_t.astype(jnp.bfloat16)

    inputs = (x_t, masks, w1_t, w2ws_t, g1p, b1p, g2r, b2r)

    flops = (2 * NHW * Cout * (9 * Cpad)                 # conv1
             + 2 * NHW * Cout * (9 * Cout + Cpad)        # conv2 + fused shortcut
             + 2 * 2 * NHW * (Cpad + Cout))              # BN lane sums on MXU
    bytes_accessed = (sum(int(a.size) * a.dtype.itemsize for a in inputs)
                      + Cout * NHW * 4)

    out_t = pl.pallas_call(
        functools.partial(wrn_block_kernel, W=W),
        out_shape=jax.ShapeDtypeStruct((Cout, NHW), jnp.float32),
        grid=(1,),
        in_specs=[_full_spec(a) for a in inputs],
        out_specs=pl.BlockSpec((Cout, NHW), lambda i: (0, 0)),
        compiler_params=pltpu.CompilerParams(
            dimension_semantics=("arbitrary",)),
        cost_estimate=pl.CostEstimate(flops=flops, transcendentals=0,
                                      bytes_accessed=bytes_accessed),
    )(*inputs)

    return out_t.T.reshape(N, H, W, Cout)


def reference(x, params):
    """Pure-JAX reference matching the PyTorch forward (training-mode BN, f32)."""
    w1, w2, ws, g1, b1, g2, b2 = params
    dn = ('NHWC', 'HWIO', 'NHWC')

    def bn_relu(t, g, b):
        m = t.mean(axis=(0, 1, 2), keepdims=True)
        v = ((t - m) ** 2).mean(axis=(0, 1, 2), keepdims=True)
        return jnp.maximum((t - m) / jnp.sqrt(v + EPS) * g + b, 0.0)

    y = bn_relu(x, g1, b1)
    out = lax.conv_general_dilated(y, w1, (1, 1), 'SAME', dimension_numbers=dn,
                                   precision=lax.Precision.HIGHEST)
    out = bn_relu(out, g2, b2)
    out = lax.conv_general_dilated(out, w2, (1, 1), 'SAME', dimension_numbers=dn,
                                   precision=lax.Precision.HIGHEST)
    z = jnp.einsum('nhwc,cd->nhwd', y, ws, precision=lax.Precision.HIGHEST)
    return z + out


if __name__ == "__main__":
    key = jax.random.PRNGKey(0)
    ks = jax.random.split(key, 8)
    N, H, W, Cin, Cout = 2, 16, 16, 4, 8

    x = jax.random.normal(ks[0], (N, H, W, Cin), jnp.float32)
    w1 = 0.1 * jax.random.normal(ks[1], (3, 3, Cin, Cout), jnp.float32)
    w2 = 0.1 * jax.random.normal(ks[2], (3, 3, Cout, Cout), jnp.float32)
    ws = 0.1 * jax.random.normal(ks[3], (Cin, Cout), jnp.float32)
    g1 = 1.0 + 0.1 * jax.random.normal(ks[4], (Cin,), jnp.float32)
    b1 = 0.1 * jax.random.normal(ks[5], (Cin,), jnp.float32)
    g2 = 1.0 + 0.1 * jax.random.normal(ks[6], (Cout,), jnp.float32)
    b2 = 0.1 * jax.random.normal(ks[7], (Cout,), jnp.float32)
    params = (w1, w2, ws, g1, b1, g2, b2)

    out = wide_resnet_block(x, params)
    jax.block_until_ready(out)

    ref = reference(x, params)
    err = float(np.max(np.abs(np.asarray(out) - np.asarray(ref))))
    # Tolerance accounts for bf16 conv inputs (f32 accumulation); the f32
    # reference uses HIGHEST-precision convolutions.
    assert np.allclose(np.asarray(out), np.asarray(ref), rtol=3e-2, atol=3e-2), err

    print("KERNEL_OK")
</pallas_src>

<mosaic_0001>
module attributes {stable_mosaic.version = 11 : i64} {
  func.func @wrn_block_kernel(%arg0: i32, %arg1: memref<8x512xf32, #tpu.memory_space<vmem>>, %arg2: memref<9x8x512xf32, #tpu.memory_space<vmem>>, %arg3: memref<8x72xbf16, #tpu.memory_space<vmem>>, %arg4: memref<8x80xbf16, #tpu.memory_space<vmem>>, %arg5: memref<8x1xf32, #tpu.memory_space<vmem>>, %arg6: memref<8x1xf32, #tpu.memory_space<vmem>>, %arg7: memref<8x1xf32, #tpu.memory_space<vmem>>, %arg8: memref<8x1xf32, #tpu.memory_space<vmem>>, %arg9: memref<8x512xf32, #tpu.memory_space<vmem>>) attributes {dimension_semantics = [#tpu.dimension_semantics<arbitrary>], iteration_bounds = array<i64: 1>, scalar_prefetch = 0 : i64, scratch_operands = 0 : i64, tpu.core_type = #tpu.core_type<tc>, window_params = [{pipeline_mode = #tpu.pipeline_mode<synchronous>, transform_indices = @transform_0, window_bounds = array<i64: 8, 512>}, {pipeline_mode = #tpu.pipeline_mode<synchronous>, transform_indices = @transform_1, window_bounds = array<i64: 9, 8, 512>}, {pipeline_mode = #tpu.pipeline_mode<synchronous>, transform_indices = @transform_2, window_bounds = array<i64: 8, 72>}, {pipeline_mode = #tpu.pipeline_mode<synchronous>, transform_indices = @transform_3, window_bounds = array<i64: 8, 80>}, {pipeline_mode = #tpu.pipeline_mode<synchronous>, transform_indices = @transform_4, window_bounds = array<i64: 8, 1>}, {pipeline_mode = #tpu.pipeline_mode<synchronous>, transform_indices = @transform_5, window_bounds = array<i64: 8, 1>}, {pipeline_mode = #tpu.pipeline_mode<synchronous>, transform_indices = @transform_6, window_bounds = array<i64: 8, 1>}, {pipeline_mode = #tpu.pipeline_mode<synchronous>, transform_indices = @transform_7, window_bounds = array<i64: 8, 1>}, {pipeline_mode = #tpu.pipeline_mode<synchronous>, transform_indices = @transform_8, window_bounds = array<i64: 8, 512>}]} {
    %cst = arith.constant 1.000000e+00 : f32
    %0 = vector.broadcast %cst : f32 to vector<512x1xf32>
    %c0 = arith.constant 0 : index
    %c0_0 = arith.constant 0 : index
    %1 = vector.load %arg1[%c0, %c0_0] : memref<8x512xf32, #tpu.memory_space<vmem>>, vector<8x512xf32>
    %c0_1 = arith.constant 0 : index
    %c0_2 = arith.constant 0 : index
    %2 = vector.load %arg5[%c0_1, %c0_2] : memref<8x1xf32, #tpu.memory_space<vmem>>, vector<8x1xf32>
    %c0_3 = arith.constant 0 : index
    %c0_4 = arith.constant 0 : index
    %3 = vector.load %arg6[%c0_3, %c0_4] : memref<8x1xf32, #tpu.memory_space<vmem>>, vector<8x1xf32>
    %cst_5 = arith.constant dense<0.000000e+00> : vector<8x1xf32>
    %4 = tpu.matmul %1, %0, %cst_5 {dimension_numbers = #tpu.dot_dimension_numbers<[1], [0], [0], [1], [0, 0, 1, 1], [], []>} : vector<8x512xf32>, vector<512x1xf32>, vector<8x1xf32> -> vector<8x1xf32>
    %5 = arith.mulf %1, %1 : vector<8x512xf32>
    %cst_6 = arith.constant dense<0.000000e+00> : vector<8x1xf32>
    %6 = tpu.matmul %5, %0, %cst_6 {dimension_numbers = #tpu.dot_dimension_numbers<[1], [0], [0], [1], [0, 0, 1, 1], [], []>} : vector<8x512xf32>, vector<512x1xf32>, vector<8x1xf32> -> vector<8x1xf32>
    %cst_7 = arith.constant 0.001953125 : f32
    %7 = vector.broadcast %cst_7 : f32 to vector<8x1xf32>
    %8 = arith.mulf %4, %7 : vector<8x1xf32>
    %cst_8 = arith.constant 0.001953125 : f32
    %9 = vector.broadcast %cst_8 : f32 to vector<8x1xf32>
    %10 = arith.mulf %6, %9 : vector<8x1xf32>
    %11 = arith.mulf %8, %8 : vector<8x1xf32>
    %12 = arith.subf %10, %11 : vector<8x1xf32>
    %cst_9 = arith.constant 0.000000e+00 : f32
    %13 = vector.broadcast %cst_9 : f32 to vector<8x1xf32>
    %14 = arith.maximumf %12, %13 : vector<8x1xf32>
    %15 = vector.broadcast %8 : vector<8x1xf32> to vector<8x512xf32>
    %16 = arith.subf %1, %15 : vector<8x512xf32>
    %cst_10 = arith.constant 9.99999974E-6 : f32
    %17 = vector.broadcast %cst_10 : f32 to vector<8x1xf32>
    %18 = arith.addf %14, %17 : vector<8x1xf32>
    %19 = math.rsqrt %18 : vector<8x1xf32>
    %20 = vector.broadcast %19 : vector<8x1xf32> to vector<8x512xf32>
    %21 = arith.mulf %16, %20 : vector<8x512xf32>
    %22 = vector.broadcast %2 : vector<8x1xf32> to vector<8x512xf32>
    %23 = arith.mulf %21, %22 : vector<8x512xf32>
    %24 = vector.broadcast %3 : vector<8x1xf32> to vector<8x512xf32>
    %25 = arith.addf %23, %24 : vector<8x512xf32>
    %cst_11 = arith.constant 0.000000e+00 : f32
    %26 = vector.broadcast %cst_11 : f32 to vector<8x512xf32>
    %27 = arith.maximumf %25, %26 : vector<8x512xf32>
    %c17_i32 = arith.constant 17 : i32
    %28 = tpu.dynamic_rotate %27 by %c17_i32 dim 1 : vector<8x512xf32>, i32 -> vector<8x512xf32>
    %c0_12 = arith.constant 0 : index
    %c0_13 = arith.constant 0 : index
    %c0_14 = arith.constant 0 : index
    %29 = vector.load %arg2[%c0_12, %c0_13, %c0_14] : memref<9x8x512xf32, #tpu.memory_space<vmem>>, vector<1x8x512xf32>
    %30 = vector.shape_cast %29 : vector<1x8x512xf32> to vector<8x512xf32>
    %31 = arith.mulf %28, %30 : vector<8x512xf32>
    %c16_i32 = arith.constant 16 : i32
    %32 = tpu.dynamic_rotate %27 by %c16_i32 dim 1 : vector<8x512xf32>, i32 -> vector<8x512xf32>
    %c1 = arith.constant 1 : index
    %c0_15 = arith.constant 0 : index
    %c0_16 = arith.constant 0 : index
    %33 = vector.load %arg2[%c1, %c0_15, %c0_16] : memref<9x8x512xf32, #tpu.memory_space<vmem>>, vector<1x8x512xf32>
    %34 = vector.shape_cast %33 : vector<1x8x512xf32> to vector<8x512xf32>
    %35 = arith.mulf %32, %34 : vector<8x512xf32>
    %c15_i32 = arith.constant 15 : i32
    %36 = tpu.dynamic_rotate %27 by %c15_i32 dim 1 : vector<8x512xf32>, i32 -> vector<8x512xf32>
    %c2 = arith.constant 2 : index
    %c0_17 = arith.constant 0 : index
    %c0_18 = arith.constant 0 : index
    %37 = vector.load %arg2[%c2, %c0_17, %c0_18] : memref<9x8x512xf32, #tpu.memory_space<vmem>>, vector<1x8x512xf32>
    %38 = vector.shape_cast %37 : vector<1x8x512xf32> to vector<8x512xf32>
    %39 = arith.mulf %36, %38 : vector<8x512xf32>
    %c1_i32 = arith.constant 1 : i32
    %40 = tpu.dynamic_rotate %27 by %c1_i32 dim 1 : vector<8x512xf32>, i32 -> vector<8x512xf32>
    %c3 = arith.constant 3 : index
    %c0_19 = arith.constant 0 : index
    %c0_20 = arith.constant 0 : index
    %41 = vector.load %arg2[%c3, %c0_19, %c0_20] : memref<9x8x512xf32, #tpu.memory_space<vmem>>, vector<1x8x512xf32>
    %42 = vector.shape_cast %41 : vector<1x8x512xf32> to vector<8x512xf32>
    %43 = arith.mulf %40, %42 : vector<8x512xf32>
    %c511_i32 = arith.constant 511 : i32
    %44 = tpu.dynamic_rotate %27 by %c511_i32 dim 1 : vector<8x512xf32>, i32 -> vector<8x512xf32>
    %c5 = arith.constant 5 : index
    %c0_21 = arith.constant 0 : index
    %c0_22 = arith.constant 0 : index
    %45 = vector.load %arg2[%c5, %c0_21, %c0_22] : memref<9x8x512xf32, #tpu.memory_space<vmem>>, vector<1x8x512xf32>
    %46 = vector.shape_cast %45 : vector<1x8x512xf32> to vector<8x512xf32>
    %47 = arith.mulf %44, %46 : vector<8x512xf32>
    %c497_i32 = arith.constant 497 : i32
    %48 = tpu.dynamic_rotate %27 by %c497_i32 dim 1 : vector<8x512xf32>, i32 -> vector<8x512xf32>
    %c6 = arith.constant 6 : index
    %c0_23 = arith.constant 0 : index
    %c0_24 = arith.constant 0 : index
    %49 = vector.load %arg2[%c6, %c0_23, %c0_24] : memref<9x8x512xf32, #tpu.memory_space<vmem>>, vector<1x8x512xf32>
    %50 = vector.shape_cast %49 : vector<1x8x512xf32> to vector<8x512xf32>
    %51 = arith.mulf %48, %50 : vector<8x512xf32>
    %c496_i32 = arith.constant 496 : i32
    %52 = tpu.dynamic_rotate %27 by %c496_i32 dim 1 : vector<8x512xf32>, i32 -> vector<8x512xf32>
    %c7 = arith.constant 7 : index
    %c0_25 = arith.constant 0 : index
    %c0_26 = arith.constant 0 : index
    %53 = vector.load %arg2[%c7, %c0_25, %c0_26] : memref<9x8x512xf32, #tpu.memory_space<vmem>>, vector<1x8x512xf32>
    %54 = vector.shape_cast %53 : vector<1x8x512xf32> to vector<8x512xf32>
    %55 = arith.mulf %52, %54 : vector<8x512xf32>
    %c495_i32 = arith.constant 495 : i32
    %56 = tpu.dynamic_rotate %27 by %c495_i32 dim 1 : vector<8x512xf32>, i32 -> vector<8x512xf32>
    %c8 = arith.constant 8 : index
    %c0_27 = arith.constant 0 : index
    %c0_28 = arith.constant 0 : index
    %57 = vector.load %arg2[%c8, %c0_27, %c0_28] : memref<9x8x512xf32, #tpu.memory_space<vmem>>, vector<1x8x512xf32>
    %58 = vector.shape_cast %57 : vector<1x8x512xf32> to vector<8x512xf32>
    %59 = arith.mulf %56, %58 : vector<8x512xf32>
    %60 = tpu.concatenate %31, %35, %39, %43, %27, %47, %51, %55, %59 in 0 : vector<8x512xf32>, vector<8x512xf32>, vector<8x512xf32>, vector<8x512xf32>, vector<8x512xf32>, vector<8x512xf32>, vector<8x512xf32>, vector<8x512xf32>, vector<8x512xf32> -> vector<72x512xf32>
    %c0_29 = arith.constant 0 : index
    %c0_30 = arith.constant 0 : index
    %61 = vector.load %arg3[%c0_29, %c0_30] : memref<8x72xbf16, #tpu.memory_space<vmem>>, vector<8x72xbf16>
    %62 = arith.truncf %60 : vector<72x512xf32> to vector<72x512xbf16>
    %cst_31 = arith.constant dense<0.000000e+00> : vector<8x512xf32>
    %63 = tpu.matmul %61, %62, %cst_31 {dimension_numbers = #tpu.dot_dimension_numbers<[1], [0], [0], [1], [0, 0, 1, 1], [], []>} : vector<8x72xbf16>, vector<72x512xbf16>, vector<8x512xf32> -> vector<8x512xf32>
    %c0_32 = arith.constant 0 : index
    %c0_33 = arith.constant 0 : index
    %64 = vector.load %arg7[%c0_32, %c0_33] : memref<8x1xf32, #tpu.memory_space<vmem>>, vector<8x1xf32>
    %c0_34 = arith.constant 0 : index
    %c0_35 = arith.constant 0 : index
    %65 = vector.load %arg8[%c0_34, %c0_35] : memref<8x1xf32, #tpu.memory_space<vmem>>, vector<8x1xf32>
    %cst_36 = arith.constant dense<0.000000e+00> : vector<8x1xf32>
    %66 = tpu.matmul %63, %0, %cst_36 {dimension_numbers = #tpu.dot_dimension_numbers<[1], [0], [0], [1], [0, 0, 1, 1], [], []>} : vector<8x512xf32>, vector<512x1xf32>, vector<8x1xf32> -> vector<8x1xf32>
    %67 = arith.mulf %63, %63 : vector<8x512xf32>
    %cst_37 = arith.constant dense<0.000000e+00> : vector<8x1xf32>
    %68 = tpu.matmul %67, %0, %cst_37 {dimension_numbers = #tpu.dot_dimension_numbers<[1], [0], [0], [1], [0, 0, 1, 1], [], []>} : vector<8x512xf32>, vector<512x1xf32>, vector<8x1xf32> -> vector<8x1xf32>
    %cst_38 = arith.constant 0.001953125 : f32
    %69 = vector.broadcast %cst_38 : f32 to vector<8x1xf32>
    %70 = arith.mulf %66, %69 : vector<8x1xf32>
    %cst_39 = arith.constant 0.001953125 : f32
    %71 = vector.broadcast %cst_39 : f32 to vector<8x1xf32>
    %72 = arith.mulf %68, %71 : vector<8x1xf32>
    %73 = arith.mulf %70, %70 : vector<8x1xf32>
    %74 = arith.subf %72, %73 : vector<8x1xf32>
    %cst_40 = arith.constant 0.000000e+00 : f32
    %75 = vector.broadcast %cst_40 : f32 to vector<8x1xf32>
    %76 = arith.maximumf %74, %75 : vector<8x1xf32>
    %77 = vector.broadcast %70 : vector<8x1xf32> to vector<8x512xf32>
    %78 = arith.subf %63, %77 : vector<8x512xf32>
    %cst_41 = arith.constant 9.99999974E-6 : f32
    %79 = vector.broadcast %cst_41 : f32 to vector<8x1xf32>
    %80 = arith.addf %76, %79 : vector<8x1xf32>
    %81 = math.rsqrt %80 : vector<8x1xf32>
    %82 = vector.broadcast %81 : vector<8x1xf32> to vector<8x512xf32>
    %83 = arith.mulf %78, %82 : vector<8x512xf32>
    %84 = vector.broadcast %64 : vector<8x1xf32> to vector<8x512xf32>
    %85 = arith.mulf %83, %84 : vector<8x512xf32>
    %86 = vector.broadcast %65 : vector<8x1xf32> to vector<8x512xf32>
    %87 = arith.addf %85, %86 : vector<8x512xf32>
    %cst_42 = arith.constant 0.000000e+00 : f32
    %88 = vector.broadcast %cst_42 : f32 to vector<8x512xf32>
    %89 = arith.maximumf %87, %88 : vector<8x512xf32>
    %c17_i32_43 = arith.constant 17 : i32
    %90 = tpu.dynamic_rotate %89 by %c17_i32_43 dim 1 : vector<8x512xf32>, i32 -> vector<8x512xf32>
    %c0_44 = arith.constant 0 : index
    %c0_45 = arith.constant 0 : index
    %c0_46 = arith.constant 0 : index
    %91 = vector.load %arg2[%c0_44, %c0_45, %c0_46] : memref<9x8x512xf32, #tpu.memory_space<vmem>>, vector<1x8x512xf32>
    %92 = vector.shape_cast %91 : vector<1x8x512xf32> to vector<8x512xf32>
    %93 = arith.mulf %90, %92 : vector<8x512xf32>
    %c16_i32_47 = arith.constant 16 : i32
    %94 = tpu.dynamic_rotate %89 by %c16_i32_47 dim 1 : vector<8x512xf32>, i32 -> vector<8x512xf32>
    %c1_48 = arith.constant 1 : index
    %c0_49 = arith.constant 0 : index
    %c0_50 = arith.constant 0 : index
    %95 = vector.load %arg2[%c1_48, %c0_49, %c0_50] : memref<9x8x512xf32, #tpu.memory_space<vmem>>, vector<1x8x512xf32>
    %96 = vector.shape_cast %95 : vector<1x8x512xf32> to vector<8x512xf32>
    %97 = arith.mulf %94, %96 : vector<8x512xf32>
    %c15_i32_51 = arith.constant 15 : i32
    %98 = tpu.dynamic_rotate %89 by %c15_i32_51 dim 1 : vector<8x512xf32>, i32 -> vector<8x512xf32>
    %c2_52 = arith.constant 2 : index
    %c0_53 = arith.constant 0 : index
    %c0_54 = arith.constant 0 : index
    %99 = vector.load %arg2[%c2_52, %c0_53, %c0_54] : memref<9x8x512xf32, #tpu.memory_space<vmem>>, vector<1x8x512xf32>
    %100 = vector.shape_cast %99 : vector<1x8x512xf32> to vector<8x512xf32>
    %101 = arith.mulf %98, %100 : vector<8x512xf32>
    %c1_i32_55 = arith.constant 1 : i32
    %102 = tpu.dynamic_rotate %89 by %c1_i32_55 dim 1 : vector<8x512xf32>, i32 -> vector<8x512xf32>
    %c3_56 = arith.constant 3 : index
    %c0_57 = arith.constant 0 : index
    %c0_58 = arith.constant 0 : index
    %103 = vector.load %arg2[%c3_56, %c0_57, %c0_58] : memref<9x8x512xf32, #tpu.memory_space<vmem>>, vector<1x8x512xf32>
    %104 = vector.shape_cast %103 : vector<1x8x512xf32> to vector<8x512xf32>
    %105 = arith.mulf %102, %104 : vector<8x512xf32>
    %c511_i32_59 = arith.constant 511 : i32
    %106 = tpu.dynamic_rotate %89 by %c511_i32_59 dim 1 : vector<8x512xf32>, i32 -> vector<8x512xf32>
    %c5_60 = arith.constant 5 : index
    %c0_61 = arith.constant 0 : index
    %c0_62 = arith.constant 0 : index
    %107 = vector.load %arg2[%c5_60, %c0_61, %c0_62] : memref<9x8x512xf32, #tpu.memory_space<vmem>>, vector<1x8x512xf32>
    %108 = vector.shape_cast %107 : vector<1x8x512xf32> to vector<8x512xf32>
    %109 = arith.mulf %106, %108 : vector<8x512xf32>
    %c497_i32_63 = arith.constant 497 : i32
    %110 = tpu.dynamic_rotate %89 by %c497_i32_63 dim 1 : vector<8x512xf32>, i32 -> vector<8x512xf32>
    %c6_64 = arith.constant 6 : index
    %c0_65 = arith.constant 0 : index
    %c0_66 = arith.constant 0 : index
    %111 = vector.load %arg2[%c6_64, %c0_65, %c0_66] : memref<9x8x512xf32, #tpu.memory_space<vmem>>, vector<1x8x512xf32>
    %112 = vector.shape_cast %111 : vector<1x8x512xf32> to vector<8x512xf32>
    %113 = arith.mulf %110, %112 : vector<8x512xf32>
    %c496_i32_67 = arith.constant 496 : i32
    %114 = tpu.dynamic_rotate %89 by %c496_i32_67 dim 1 : vector<8x512xf32>, i32 -> vector<8x512xf32>
    %c7_68 = arith.constant 7 : index
    %c0_69 = arith.constant 0 : index
    %c0_70 = arith.constant 0 : index
    %115 = vector.load %arg2[%c7_68, %c0_69, %c0_70] : memref<9x8x512xf32, #tpu.memory_space<vmem>>, vector<1x8x512xf32>
    %116 = vector.shape_cast %115 : vector<1x8x512xf32> to vector<8x512xf32>
    %117 = arith.mulf %114, %116 : vector<8x512xf32>
    %c495_i32_71 = arith.constant 495 : i32
    %118 = tpu.dynamic_rotate %89 by %c495_i32_71 dim 1 : vector<8x512xf32>, i32 -> vector<8x512xf32>
    %c8_72 = arith.constant 8 : index
    %c0_73 = arith.constant 0 : index
    %c0_74 = arith.constant 0 : index
    %119 = vector.load %arg2[%c8_72, %c0_73, %c0_74] : memref<9x8x512xf32, #tpu.memory_space<vmem>>, vector<1x8x512xf32>
    %120 = vector.shape_cast %119 : vector<1x8x512xf32> to vector<8x512xf32>
    %121 = arith.mulf %118, %120 : vector<8x512xf32>
    %122 = tpu.concatenate %93, %97, %101, %105, %89, %109, %113, %117, %121 in 0 : vector<8x512xf32>, vector<8x512xf32>, vector<8x512xf32>, vector<8x512xf32>, vector<8x512xf32>, vector<8x512xf32>, vector<8x512xf32>, vector<8x512xf32>, vector<8x512xf32> -> vector<72x512xf32>
    %123 = tpu.concatenate %122, %27 in 0 : vector<72x512xf32>, vector<8x512xf32> -> vector<80x512xf32>
    %c0_75 = arith.constant 0 : index
    %c0_76 = arith.constant 0 : index
    %124 = vector.load %arg4[%c0_75, %c0_76] : memref<8x80xbf16, #tpu.memory_space<vmem>>, vector<8x80xbf16>
    %125 = arith.truncf %123 : vector<80x512xf32> to vector<80x512xbf16>
    %cst_77 = arith.constant dense<0.000000e+00> : vector<8x512xf32>
    %126 = tpu.matmul %124, %125, %cst_77 {dimension_numbers = #tpu.dot_dimension_numbers<[1], [0], [0], [1], [0, 0, 1, 1], [], []>} : vector<8x80xbf16>, vector<80x512xbf16>, vector<8x512xf32> -> vector<8x512xf32>
    %c0_78 = arith.constant 0 : index
    %c0_79 = arith.constant 0 : index
    %127 = vector.load %arg9[%c0_78, %c0_79] : memref<8x512xf32, #tpu.memory_space<vmem>>, vector<8x512xf32>
    tpu.vector_store %arg9[%c0_78, %c0_79], %126 {strides = array<i32>} : memref<8x512xf32, #tpu.memory_space<vmem>>, vector<8x512xf32>,
    return
  }
  func.func @transform_0(%arg0: i32) -> (i32, i32) {
    %c0_i32 = arith.constant 0 : i32
    %c0_i32_0 = arith.constant 0 : i32
    %c0_i32_1 = arith.constant 0 : i32
    return %c0_i32, %c0_i32_0 : i32, i32
  }
  func.func @transform_1(%arg0: i32) -> (i32, i32, i32) {
    %c0_i32 = arith.constant 0 : i32
    %c0_i32_0 = arith.constant 0 : i32
    %c0_i32_1 = arith.constant 0 : i32
    %c0_i32_2 = arith.constant 0 : i32
    return %c0_i32, %c0_i32_0, %c0_i32_1 : i32, i32, i32
  }
  func.func @transform_2(%arg0: i32) -> (i32, i32) {
    %c0_i32 = arith.constant 0 : i32
    %c0_i32_0 = arith.constant 0 : i32
    %c0_i32_1 = arith.constant 0 : i32
    return %c0_i32, %c0_i32_0 : i32, i32
  }
  func.func @transform_3(%arg0: i32) -> (i32, i32) {
    %c0_i32 = arith.constant 0 : i32
    %c0_i32_0 = arith.constant 0 : i32
    %c0_i32_1 = arith.constant 0 : i32
    return %c0_i32, %c0_i32_0 : i32, i32
  }
  func.func @transform_4(%arg0: i32) -> (i32, i32) {
    %c0_i32 = arith.constant 0 : i32
    %c0_i32_0 = arith.constant 0 : i32
    %c0_i32_1 = arith.constant 0 : i32
    return %c0_i32, %c0_i32_0 : i32, i32
  }
  func.func @transform_5(%arg0: i32) -> (i32, i32) {
    %c0_i32 = arith.constant 0 : i32
    %c0_i32_0 = arith.constant 0 : i32
    %c0_i32_1 = arith.constant 0 : i32
    return %c0_i32, %c0_i32_0 : i32, i32
  }
  func.func @transform_6(%arg0: i32) -> (i32, i32) {
    %c0_i32 = arith.constant 0 : i32
    %c0_i32_0 = arith.constant 0 : i32
    %c0_i32_1 = arith.constant 0 : i32
    return %c0_i32, %c0_i32_0 : i32, i32
  }
  func.func @transform_7(%arg0: i32) -> (i32, i32) {
    %c0_i32 = arith.constant 0 : i32
    %c0_i32_0 = arith.constant 0 : i32
    %c0_i32_1 = arith.constant 0 : i32
    return %c0_i32, %c0_i32_0 : i32, i32
  }
  func.func @transform_8(%arg0: i32) -> (i32, i32) {
    %c0_i32 = arith.constant 0 : i32
    %c0_i32_0 = arith.constant 0 : i32
    %c0_i32_1 = arith.constant 0 : i32
    return %c0_i32, %c0_i32_0 : i32, i32
  }
}

</mosaic_0001>

<llo_original>
// kernel: tpu_custom_call.1
$region0: #{tpu_custom_call.1}
  #allocation0 [shape = 'u32[]', space=smem, size = 0x4, offset = 0x4, fixed_abs, tag = 'smem constant byte address 0x4 - core index']
  #allocation1 [shape = 'u32[72,128]{1,0:T(1,128)}', space=vmem, size = 0x9000, scoped, tag = 'internal scratch']
  %s0 = inlined_call_operand.vmem [shape: f32[8,512], index: 0, kind: input, shape index: {}]
  %s1 = inlined_call_operand.hbm [shape: f32[9,8,512], index: 1, kind: input, shape index: {}]
  %s2 = inlined_call_operand.vmem [shape: bf16[8,72], index: 2, kind: input, shape index: {}]
  %s3 = inlined_call_operand.hbm [shape: bf16[8,80], index: 3, kind: input, shape index: {}]
  %s4 = inlined_call_operand.vmem [shape: f32[8,1], index: 4, kind: input, shape index: {}]
  %s5 = inlined_call_operand.vmem [shape: f32[8,1], index: 5, kind: input, shape index: {}]
  %s6 = inlined_call_operand.vmem [shape: f32[8,1], index: 6, kind: input, shape index: {}]
  %s7 = inlined_call_operand.vmem [shape: f32[8,1], index: 7, kind: input, shape index: {}]
  %s8 = inlined_call_operand.hbm [shape: f32[8,512], index: 8, kind: output, shape index: {}]
  %s9 = sld [smem:[#allocation0]]
  $region50: #{tpu_custom_call.1} parent=0
    _
  %s11 = ssub.s32 1, %s9
  %s12 = scalar_select 0, %s11, %s9
  $region1: #{tpu_custom_call.1} parent=0
    #allocation2 [shape = 'u8[147456]{0}', space=vmem, size = 0x24000, scoped, tag = 'input window, operand 1, single buffered']
    #allocation3 [shape = 's32[1]{0}', space=sflag, size = 0x4, scoped, tag = 'scoped memory for tpu_custom_call.1']
    #allocation4 [shape = 's32[1]{0}', space=sflag, size = 0x4, scoped, tag = 'scoped memory for tpu_custom_call.1']
    #allocation5 [shape = 'u8[2048]{0}', space=vmem, size = 0x800, scoped, tag = 'input window, operand 3, single buffered']
    #allocation6 [shape = 's32[1]{0}', space=sflag, size = 0x4, scoped, tag = 'scoped memory for tpu_custom_call.1']
    #allocation7 [shape = 'u8[16384]{0}', space=vmem, size = 0x4000, scoped, tag = 'output window, operand 0, single buffered']
    %13 = vsyncpa [#allocation3], 0
    %14 = vsyncpa [#allocation6], 0
    %15 = vsyncpa [#allocation4], 0
    // Predicated region
    $region2: #{tpu_custom_call.1} parent=1 // pred_check
      _
    $region3: #{tpu_custom_call.1} parent=1 // pred_check_branch
      %17 = sbr.rel (0) target = $region5
    $region4: #{tpu_custom_call.1} parent=1 // pred_region
      _
    $region5: #{tpu_custom_call.1} parent=1 // pred_fallthru
      _
    // Predicated region
    $region6: #{tpu_custom_call.1} parent=1 // pred_check
      _
    $region7: #{tpu_custom_call.1} parent=1 // pred_check_branch
      %19 = sbr.rel (0) target = $region9
    $region8: #{tpu_custom_call.1} parent=1 // pred_region
      %21 = vsyncadd [#allocation3], 0
      %s22 = sshll.u32 %s1, 4
      %s23 = int_to_ptr.hbm [resolvable:$true] %s22
      %s24 = sshll.u32 [#allocation2], 4
      %s25 = int_to_ptr.vmem [resolvable:$true] %s24
      %30 = dma.hbm_to_vmem [thread:$0]  %s23, 4608, %s25, [#allocation3], 512, 512, 32
    $region9: #{tpu_custom_call.1} parent=1 // pred_fallthru
      _
    // Predicated region
    $region10: #{tpu_custom_call.1} parent=1 // pred_check
      _
    $region11: #{tpu_custom_call.1} parent=1 // pred_check_branch
      %32 = sbr.rel (0) target = $region13
    $region12: #{tpu_custom_call.1} parent=1 // pred_region
      _
    $region13: #{tpu_custom_call.1} parent=1 // pred_fallthru
      _
    // Predicated region
    $region14: #{tpu_custom_call.1} parent=1 // pred_check
      _
    $region15: #{tpu_custom_call.1} parent=1 // pred_check_branch
      %34 = sbr.rel (0) target = $region17
    $region16: #{tpu_custom_call.1} parent=1 // pred_region
      %36 = vsyncadd [#allocation6], 0
      %s38 = sshll.u32 %s3, 4
      %s39 = int_to_ptr.hbm [resolvable:$true] %s38
      %s40 = sshll.u32 [#allocation5], 4
      %s41 = int_to_ptr.vmem [resolvable:$true] %s40
      %43 = dma.hbm_to_vmem [thread:$0]  %s39, 64, %s41, [#allocation6]
    $region17: #{tpu_custom_call.1} parent=1 // pred_fallthru
      _
    // Predicated region
    $region18: #{tpu_custom_call.1} parent=1 // pred_check
      _
    $region19: #{tpu_custom_call.1} parent=1 // pred_check_branch
      %45 = sbr.rel (0) target = $region21
    $region20: #{tpu_custom_call.1} parent=1 // pred_region
      _
    $region21: #{tpu_custom_call.1} parent=1 // pred_fallthru
      _
    // Predicated region
    $region22: #{tpu_custom_call.1} parent=1 // pred_check
      _
    $region23: #{tpu_custom_call.1} parent=1 // pred_check_branch
      %47 = sbr.rel (0) target = $region25
    $region24: #{tpu_custom_call.1} parent=1 // pred_region
      _
    $region25: #{tpu_custom_call.1} parent=1 // pred_fallthru
      _
    // Predicated region
    $region26: #{tpu_custom_call.1} parent=1 // pred_check
      _
    $region27: #{tpu_custom_call.1} parent=1 // pred_check_branch
      %49 = sbr.rel (0) target = $region29
    $region28: #{tpu_custom_call.1} parent=1 // pred_region
      _
    $region29: #{tpu_custom_call.1} parent=1 // pred_fallthru
      _
    // Predicated region
    $region30: #{tpu_custom_call.1} parent=1 // pred_check
      _
    $region31: #{tpu_custom_call.1} parent=1 // pred_check_branch
      %51 = sbr.rel (0) target = $region33
    $region32: #{tpu_custom_call.1} parent=1 // pred_region
      _
    $region33: #{tpu_custom_call.1} parent=1 // pred_fallthru
      _
    // Predicated region
    $region34: #{tpu_custom_call.1} parent=1 // pred_check
      _
    $region35: #{tpu_custom_call.1} parent=1 // pred_check_branch
      %53 = sbr.rel (0) target = $region37
    $region36: #{tpu_custom_call.1} parent=1 // pred_region
      %55 = dma.done [#allocation3], 4608
    $region37: #{tpu_custom_call.1} parent=1 // pred_fallthru
      _
    // Predicated region
    $region38: #{tpu_custom_call.1} parent=1 // pred_check
      _
    $region39: #{tpu_custom_call.1} parent=1 // pred_check_branch
      %57 = sbr.rel (0) target = $region41
    $region40: #{tpu_custom_call.1} parent=1 // pred_region
      %59 = dma.done [#allocation6], 64
    $region41: #{tpu_custom_call.1} parent=1 // pred_fallthru
      _
    %v61 = vld [vmem:[%s0] sm:$0xff]
    %v62 = vld [vmem:[%s0 + $0x8] sm:$0xff]
    %v63 = vld [vmem:[%s0 + $0x10] sm:$0xff]
    %v64 = vld [vmem:[%s0 + $0x18] sm:$0xff]
    %v65 = vld [vmem:[%s4] sm:$0xff]
    %v66 = vld [vmem:[%s5] sm:$0xff]
    %67 = vmatpush.msra.mxu0 1.0
    %68 = vmatpush.msra.mxu0 1.0
    %69 = vmatpush.msra.mxu0 1.0
    %70 = vmatpush.msra.mxu0 1.0
    %71 = vmatpush.msra.mxu0 1.0
    %72 = vmatpush.msra.mxu0 1.0
    %73 = vmatpush.msra.mxu0 1.0
    %74 = vmatpush.msra.mxu0 1.0
    %75 = vmatpush.msra.mxu0 1.0
    %76 = vmatpush.msra.mxu0 1.0
    %77 = vmatpush.msra.mxu0 1.0
    %78 = vmatpush.msra.mxu0 1.0
    %79 = vmatpush.msra.mxu0 1.0
    %80 = vmatpush.msra.mxu0 1.0
    %81 = vmatpush.msra.mxu0 1.0
    %82 = vmatpush.msra.mxu0 1.0
    %83 = vmatmul.f32.gmra.mxu0 %v61
    %v84 = vpop.f32.mrf.mxu0
    %v85 = vadd.f32 0.0, %v84
    %86 = vdwg.mxu0
    %87 = vmatpush.msra.mxu0 1.0
    %88 = vmatpush.msra.mxu0 1.0
    %89 = vmatpush.msra.mxu0 1.0
    %90 = vmatpush.msra.mxu0 1.0
    %91 = vmatpush.msra.mxu0 1.0
    %92 = vmatpush.msra.mxu0 1.0
    %93 = vmatpush.msra.mxu0 1.0
    %94 = vmatpush.msra.mxu0 1.0
    %95 = vmatpush.msra.mxu0 1.0
    %96 = vmatpush.msra.mxu0 1.0
    %97 = vmatpush.msra.mxu0 1.0
    %98 = vmatpush.msra.mxu0 1.0
    %99 = vmatpush.msra.mxu0 1.0
    %100 = vmatpush.msra.mxu0 1.0
    %101 = vmatpush.msra.mxu0 1.0
    %102 = vmatpush.msra.mxu0 1.0
    %103 = vmatmul.f32.gmra.mxu0 %v62
    %v104 = vpop.f32.mrf.mxu0
    %v105 = vadd.f32 %v85, %v104
    %106 = vdwg.mxu0
    %107 = vmatpush.msra.mxu0 1.0
    %108 = vmatpush.msra.mxu0 1.0
    %109 = vmatpush.msra.mxu0 1.0
    %110 = vmatpush.msra.mxu0 1.0
    %111 = vmatpush.msra.mxu0 1.0
    %112 = vmatpush.msra.mxu0 1.0
    %113 = vmatpush.msra.mxu0 1.0
    %114 = vmatpush.msra.mxu0 1.0
    %115 = vmatpush.msra.mxu0 1.0
    %116 = vmatpush.msra.mxu0 1.0
    %117 = vmatpush.msra.mxu0 1.0
    %118 = vmatpush.msra.mxu0 1.0
    %119 = vmatpush.msra.mxu0 1.0
    %120 = vmatpush.msra.mxu0 1.0
    %121 = vmatpush.msra.mxu0 1.0
    %122 = vmatpush.msra.mxu0 1.0
    %123 = vmatmul.f32.gmra.mxu0 %v63
    %v124 = vpop.f32.mrf.mxu0
    %v125 = vadd.f32 %v105, %v124
    %126 = vdwg.mxu0
    %127 = vmatpush.msra.mxu0 1.0
    %128 = vmatpush.msra.mxu0 1.0
    %129 = vmatpush.msra.mxu0 1.0
    %130 = vmatpush.msra.mxu0 1.0
    %131 = vmatpush.msra.mxu0 1.0
    %132 = vmatpush.msra.mxu0 1.0
    %133 = vmatpush.msra.mxu0 1.0
    %134 = vmatpush.msra.mxu0 1.0
    %135 = vmatpush.msra.mxu0 1.0
    %136 = vmatpush.msra.mxu0 1.0
    %137 = vmatpush.msra.mxu0 1.0
    %138 = vmatpush.msra.mxu0 1.0
    %139 = vmatpush.msra.mxu0 1.0
    %140 = vmatpush.msra.mxu0 1.0
    %141 = vmatpush.msra.mxu0 1.0
    %142 = vmatpush.msra.mxu0 1.0
    %143 = vmatmul.f32.gmra.mxu0 %v64
    %v144 = vpop.f32.mrf.mxu0
    %v145 = vadd.f32 %v125, %v144
    %146 = vdwg.mxu0
    %v147 = vmul.f32 %v61, %v61
    %v148 = vmul.f32 %v62, %v62
    %v149 = vmul.f32 %v63, %v63
    %v150 = vmul.f32 %v64, %v64
    %151 = vmatpush.msra.mxu0 1.0
    %152 = vmatpush.msra.mxu0 1.0
    %153 = vmatpush.msra.mxu0 1.0
    %154 = vmatpush.msra.mxu0 1.0
    %155 = vmatpush.msra.mxu0 1.0
    %156 = vmatpush.msra.mxu0 1.0
    %157 = vmatpush.msra.mxu0 1.0
    %158 = vmatpush.msra.mxu0 1.0
    %159 = vmatpush.msra.mxu0 1.0
    %160 = vmatpush.msra.mxu0 1.0
    %161 = vmatpush.msra.mxu0 1.0
    %162 = vmatpush.msra.mxu0 1.0
    %163 = vmatpush.msra.mxu0 1.0
    %164 = vmatpush.msra.mxu0 1.0
    %165 = vmatpush.msra.mxu0 1.0
    %166 = vmatpush.msra.mxu0 1.0
    %167 = vmatmul.f32.gmra.mxu0 %v147
    %v168 = vpop.f32.mrf.mxu0
    %v169 = vadd.f32 0.0, %v168
    %170 = vdwg.mxu0
    %171 = vmatpush.msra.mxu0 1.0
    %172 = vmatpush.msra.mxu0 1.0
    %173 = vmatpush.msra.mxu0 1.0
    %174 = vmatpush.msra.mxu0 1.0
    %175 = vmatpush.msra.mxu0 1.0
    %176 = vmatpush.msra.mxu0 1.0
    %177 = vmatpush.msra.mxu0 1.0
    %178 = vmatpush.msra.mxu0 1.0
    %179 = vmatpush.msra.mxu0 1.0
    %180 = vmatpush.msra.mxu0 1.0
    %181 = vmatpush.msra.mxu0 1.0
    %182 = vmatpush.msra.mxu0 1.0
    %183 = vmatpush.msra.mxu0 1.0
    %184 = vmatpush.msra.mxu0 1.0
    %185 = vmatpush.msra.mxu0 1.0
    %186 = vmatpush.msra.mxu0 1.0
    %187 = vmatmul.f32.gmra.mxu0 %v148
    %v188 = vpop.f32.mrf.mxu0
    %v189 = vadd.f32 %v169, %v188
    %190 = vdwg.mxu0
    %191 = vmatpush.msra.mxu0 1.0
    %192 = vmatpush.msra.mxu0 1.0
    %193 = vmatpush.msra.mxu0 1.0
    %194 = vmatpush.msra.mxu0 1.0
    %195 = vmatpush.msra.mxu0 1.0
    %196 = vmatpush.msra.mxu0 1.0
    %197 = vmatpush.msra.mxu0 1.0
    %198 = vmatpush.msra.mxu0 1.0
    %199 = vmatpush.msra.mxu0 1.0
    %200 = vmatpush.msra.mxu0 1.0
    %201 = vmatpush.msra.mxu0 1.0
    %202 = vmatpush.msra.mxu0 1.0
    %203 = vmatpush.msra.mxu0 1.0
    %204 = vmatpush.msra.mxu0 1.0
    %205 = vmatpush.msra.mxu0 1.0
    %206 = vmatpush.msra.mxu0 1.0
    %207 = vmatmul.f32.gmra.mxu0 %v149
    %v208 = vpop.f32.mrf.mxu0
    %v209 = vadd.f32 %v189, %v208
    %210 = vdwg.mxu0
    %211 = vmatpush.msra.mxu0 1.0
    %212 = vmatpush.msra.mxu0 1.0
    %213 = vmatpush.msra.mxu0 1.0
    %214 = vmatpush.msra.mxu0 1.0
    %215 = vmatpush.msra.mxu0 1.0
    %216 = vmatpush.msra.mxu0 1.0
    %217 = vmatpush.msra.mxu0 1.0
    %218 = vmatpush.msra.mxu0 1.0
    %219 = vmatpush.msra.mxu0 1.0
    %220 = vmatpush.msra.mxu0 1.0
    %221 = vmatpush.msra.mxu0 1.0
    %222 = vmatpush.msra.mxu0 1.0
    %223 = vmatpush.msra.mxu0 1.0
    %224 = vmatpush.msra.mxu0 1.0
    %225 = vmatpush.msra.mxu0 1.0
    %226 = vmatpush.msra.mxu0 1.0
    %227 = vmatmul.f32.gmra.mxu0 %v150
    %v228 = vpop.f32.mrf.mxu0
    %v229 = vadd.f32 %v209, %v228
    %230 = vdwg.mxu0
    %v231 = vmul.f32 %v145, 0.001953125
    %v232 = vmul.f32 %v229, 0.001953125
    %v233 = vmul.f32 %v231, %v231
    %v234 = vsub.f32 %v232, %v233
    %v235 = vmax.f32 %v234, 0.0
    %237 = vset.pattern.permute.xlu0 0
    %238 = vperm.xlu0 %237, %v231
    %v239 = vpop.permute.xlu0 %238
    %v241 = vsub.f32 %v61, %v239
    %v242 = vsub.f32 %v62, %v239
    %v243 = vsub.f32 %v63, %v239
    %v244 = vsub.f32 %v64, %v239
    %v245 = vadd.f32 %v235, 1e-05
    %v246 = vrsqrt.pop %v245
    %v247 = vmul.f32 %v246, %v245
    %v248 = vmul.f32 %v247, %v246
    %v249 = vmul.f32 0.5, %v248
    %v250 = vsub.f32 1.5, %v249
    %v251 = vmul.f32 %v246, %v250
    %vm252 = vweird.f32 %v245
    %vm253 = vweird.f32 %v246
    %vm254 = vmor %vm252, %vm253
    %v255 = vsel %vm254, %v246, %v251
    %257 = vset.pattern.permute.xlu0 0
    %258 = vperm.xlu0 %257, %v255
    %v259 = vpop.permute.xlu0 %258
    %v261 = vmul.f32 %v241, %v259
    %v262 = vmul.f32 %v242, %v259
    %v263 = vmul.f32 %v243, %v259
    %v264 = vmul.f32 %v244, %v259
    %266 = vset.pattern.permute.xlu0 0
    %267 = vperm.xlu0 %266, %v65
    %v268 = vpop.permute.xlu0 %267
    %v270 = vmul.f32 %v261, %v268
    %v271 = vmul.f32 %v262, %v268
    %v272 = vmul.f32 %v263, %v268
    %v273 = vmul.f32 %v264, %v268
    %275 = vset.pattern.permute.xlu0 0
    %276 = vperm.xlu0 %275, %v66
    %v277 = vpop.permute.xlu0 %276
    %v279 = vadd.f32 %v270, %v277
    %v280 = vadd.f32 %v271, %v277
    %v281 = vadd.f32 %v272, %v277
    %v282 = vadd.f32 %v273, %v277
    %v283 = vmax.f32 %v279, 0.0
    %v284 = vmax.f32 %v280, 0.0
    %v285 = vmax.f32 %v281, 0.0
    %v286 = vmax.f32 %v282, 0.0
    %287 = vrot.lane.b32.xlu0 %v283, 17
    %v288 = vpop.permute.xlu0 %287
    %289 = vrot.lane.b32.xlu0 %v284, 17
    %v290 = vpop.permute.xlu0 %289
    %291 = vrot.lane.b32.xlu0 %v285, 17
    %v292 = vpop.permute.xlu0 %291
    %293 = vrot.lane.b32.xlu0 %v286, 17
    %v294 = vpop.permute.xlu0 %293
    %v295 = vlaneseq
    %v296 = vand.u32 %v295, 127
    %vm297 = vcmp.lt.s32.totalorder %v296, 17
    %v298 = vsel %vm297, %v292, %v294
    %v299 = vsel %vm297, %v290, %v292
    %v300 = vsel %vm297, %v288, %v290
    %v301 = vsel %vm297, %v294, %v288
    %v302 = vld [vmem:[#allocation2] sm:$0xff]
    %v303 = vld [vmem:[#allocation2 + $0x8] sm:$0xff]
    %v304 = vld [vmem:[#allocation2 + $0x10] sm:$0xff]
    %v305 = vld [vmem:[#allocation2 + $0x18] sm:$0xff]
    %v306 = vmul.f32 %v301, %v302
    %v307 = vmul.f32 %v300, %v303
    %v308 = vmul.f32 %v299, %v304
    %v309 = vmul.f32 %v298, %v305
    %310 = vrot.lane.b32.xlu0 %v283, 16
    %v311 = vpop.permute.xlu0 %310
    %312 = vrot.lane.b32.xlu0 %v284, 16
    %v313 = vpop.permute.xlu0 %312
    %314 = vrot.lane.b32.xlu0 %v285, 16
    %v315 = vpop.permute.xlu0 %314
    %316 = vrot.lane.b32.xlu0 %v286, 16
    %v317 = vpop.permute.xlu0 %316
    %vm318 = vcmp.lt.s32.totalorder %v296, 16
    %v319 = vsel %vm318, %v315, %v317
    %v320 = vsel %vm318, %v313, %v315
    %v321 = vsel %vm318, %v311, %v313
    %v322 = vsel %vm318, %v317, %v311
    %s323 = scalar_lea.vmem [#allocation2], 32
    %v324 = vld [vmem:[%s323] sm:$0xff]
    %v325 = vld [vmem:[%s323 + $0x8] sm:$0xff]
    %v326 = vld [vmem:[%s323 + $0x10] sm:$0xff]
    %v327 = vld [vmem:[%s323 + $0x18] sm:$0xff]
    %v328 = vmul.f32 %v322, %v324
    %v329 = vmul.f32 %v321, %v325
    %v330 = vmul.f32 %v320, %v326
    %v331 = vmul.f32 %v319, %v327
    %332 = vrot.lane.b32.xlu0 %v283, 15
    %v333 = vpop.permute.xlu0 %332
    %334 = vrot.lane.b32.xlu0 %v284, 15
    %v335 = vpop.permute.xlu0 %334
    %336 = vrot.lane.b32.xlu0 %v285, 15
    %v337 = vpop.permute.xlu0 %336
    %338 = vrot.lane.b32.xlu0 %v286, 15
    %v339 = vpop.permute.xlu0 %338
    %vm340 = vcmp.lt.s32.totalorder %v296, 15
    %v341 = vsel %vm340, %v337, %v339
    %v342 = vsel %vm340, %v335, %v337
    %v343 = vsel %vm340, %v333, %v335
    %v344 = vsel %vm340, %v339, %v333
    %s345 = scalar_lea.vmem [#allocation2], 64
    %v346 = vld [vmem:[%s345] sm:$0xff]
    %v347 = vld [vmem:[%s345 + $0x8] sm:$0xff]
    %v348 = vld [vmem:[%s345 + $0x10] sm:$0xff]
    %v349 = vld [vmem:[%s345 + $0x18] sm:$0xff]
    %v350 = vmul.f32 %v344, %v346
    %v351 = vmul.f32 %v343, %v347
    %v352 = vmul.f32 %v342, %v348
    %v353 = vmul.f32 %v341, %v349
    %354 = vrot.lane.b32.xlu0 %v283, 1
    %v355 = vpop.permute.xlu0 %354
    %356 = vrot.lane.b32.xlu0 %v284, 1
    %v357 = vpop.permute.xlu0 %356
    %358 = vrot.lane.b32.xlu0 %v285, 1
    %v359 = vpop.permute.xlu0 %358
    %360 = vrot.lane.b32.xlu0 %v286, 1
    %v361 = vpop.permute.xlu0 %360
    %vm362 = vcmp.lt.s32.totalorder %v296, 1
    %v363 = vsel %vm362, %v359, %v361
    %v364 = vsel %vm362, %v357, %v359
    %v365 = vsel %vm362, %v355, %v357
    %v366 = vsel %vm362, %v361, %v355
    %s367 = scalar_lea.vmem [#allocation2], 96
    %v368 = vld [vmem:[%s367] sm:$0xff]
    %v369 = vld [vmem:[%s367 + $0x8] sm:$0xff]
    %v370 = vld [vmem:[%s367 + $0x10] sm:$0xff]
    %v371 = vld [vmem:[%s367 + $0x18] sm:$0xff]
    %v372 = vmul.f32 %v366, %v368
    %v373 = vmul.f32 %v365, %v369
    %v374 = vmul.f32 %v364, %v370
    %v375 = vmul.f32 %v363, %v371
    %376 = vrot.lane.b32.xlu0 %v283, 127
    %v377 = vpop.permute.xlu0 %376
    %378 = vrot.lane.b32.xlu0 %v284, 127
    %v379 = vpop.permute.xlu0 %378
    %380 = vrot.lane.b32.xlu0 %v285, 127
    %v381 = vpop.permute.xlu0 %380
    %382 = vrot.lane.b32.xlu0 %v286, 127
    %v383 = vpop.permute.xlu0 %382
    %vm384 = vcmp.lt.s32.totalorder %v296, 127
    %v385 = vsel %vm384, %v381, %v383
    %v386 = vsel %vm384, %v379, %v381
    %v387 = vsel %vm384, %v377, %v379
    %v388 = vsel %vm384, %v383, %v377
    %s389 = scalar_lea.vmem [#allocation2], 160
    %v390 = vld [vmem:[%s389] sm:$0xff]
    %v391 = vld [vmem:[%s389 + $0x8] sm:$0xff]
    %v392 = vld [vmem:[%s389 + $0x10] sm:$0xff]
    %v393 = vld [vmem:[%s389 + $0x18] sm:$0xff]
    %v394 = vmul.f32 %v387, %v390
    %v395 = vmul.f32 %v386, %v391
    %v396 = vmul.f32 %v385, %v392
    %v397 = vmul.f32 %v388, %v393
    %398 = vrot.lane.b32.xlu0 %v283, 113
    %v399 = vpop.permute.xlu0 %398
    %400 = vrot.lane.b32.xlu0 %v284, 113
    %v401 = vpop.permute.xlu0 %400
    %402 = vrot.lane.b32.xlu0 %v285, 113
    %v403 = vpop.permute.xlu0 %402
    %404 = vrot.lane.b32.xlu0 %v286, 113
    %v405 = vpop.permute.xlu0 %404
    %vm406 = vcmp.lt.s32.totalorder %v296, 113
    %v407 = vsel %vm406, %v403, %v405
    %v408 = vsel %vm406, %v401, %v403
    %v409 = vsel %vm406, %v399, %v401
    %v410 = vsel %vm406, %v405, %v399
    %s411 = scalar_lea.vmem [#allocation2], 192
    %v412 = vld [vmem:[%s411] sm:$0xff]
    %v413 = vld [vmem:[%s411 + $0x8] sm:$0xff]
    %v414 = vld [vmem:[%s411 + $0x10] sm:$0xff]
    %v415 = vld [vmem:[%s411 + $0x18] sm:$0xff]
    %v416 = vmul.f32 %v409, %v412
    %v417 = vmul.f32 %v408, %v413
    %v418 = vmul.f32 %v407, %v414
    %v419 = vmul.f32 %v410, %v415
    %420 = vrot.lane.b32.xlu0 %v283, 112
    %v421 = vpop.permute.xlu0 %420
    %422 = vrot.lane.b32.xlu0 %v284, 112
    %v423 = vpop.permute.xlu0 %422
    %424 = vrot.lane.b32.xlu0 %v285, 112
    %v425 = vpop.permute.xlu0 %424
    %426 = vrot.lane.b32.xlu0 %v286, 112
    %v427 = vpop.permute.xlu0 %426
    %vm428 = vcmp.lt.s32.totalorder %v296, 112
    %v429 = vsel %vm428, %v425, %v427
    %v430 = vsel %vm428, %v423, %v425
    %v431 = vsel %vm428, %v421, %v423
    %v432 = vsel %vm428, %v427, %v421
    %s433 = scalar_lea.vmem [#allocation2], 224
    %v434 = vld [vmem:[%s433] sm:$0xff]
    %v435 = vld [vmem:[%s433 + $0x8] sm:$0xff]
    %v436 = vld [vmem:[%s433 + $0x10] sm:$0xff]
    %v437 = vld [vmem:[%s433 + $0x18] sm:$0xff]
    %v438 = vmul.f32 %v431, %v434
    %v439 = vmul.f32 %v430, %v435
    %v440 = vmul.f32 %v429, %v436
    %v441 = vmul.f32 %v432, %v437
    %442 = vrot.lane.b32.xlu0 %v283, 111
    %v443 = vpop.permute.xlu0 %442
    %444 = vrot.lane.b32.xlu0 %v284, 111
    %v445 = vpop.permute.xlu0 %444
    %446 = vrot.lane.b32.xlu0 %v285, 111
    %v447 = vpop.permute.xlu0 %446
    %448 = vrot.lane.b32.xlu0 %v286, 111
    %v449 = vpop.permute.xlu0 %448
    %vm450 = vcmp.lt.s32.totalorder %v296, 111
    %v451 = vsel %vm450, %v447, %v449
    %v452 = vsel %vm450, %v445, %v447
    %v453 = vsel %vm450, %v443, %v445
    %v454 = vsel %vm450, %v449, %v443
    %s455 = scalar_lea.vmem [#allocation2], 256
    %v456 = vld [vmem:[%s455] sm:$0xff]
    %v457 = vld [vmem:[%s455 + $0x8] sm:$0xff]
    %v458 = vld [vmem:[%s455 + $0x10] sm:$0xff]
    %v459 = vld [vmem:[%s455 + $0x18] sm:$0xff]
    %v460 = vmul.f32 %v453, %v456
    %v461 = vmul.f32 %v452, %v457
    %v462 = vmul.f32 %v451, %v458
    %v463 = vmul.f32 %v454, %v459
    %v464 = vld [vmem:[%s2] sm:$0xf]
    %v465 = vpack.c.bf16 %v328, %v306
    %v466 = vpack.c.bf16 %v329, %v307
    %v467 = vpack.c.bf16 %v330, %v308
    %v468 = vpack.c.bf16 %v331, %v309
    %v469 = vpack.c.bf16 %v372, %v350
    %v470 = vpack.c.bf16 %v373, %v351
    %v471 = vpack.c.bf16 %v374, %v352
    %v472 = vpack.c.bf16 %v375, %v353
    %v473 = vpack.c.bf16 %v394, %v283
    %v474 = vpack.c.bf16 %v395, %v284
    %v475 = vpack.c.bf16 %v396, %v285
    %v476 = vpack.c.bf16 %v397, %v286
    %v477 = vpack.c.bf16 %v438, %v416
    %v478 = vpack.c.bf16 %v439, %v417
    %v479 = vpack.c.bf16 %v440, %v418
    %v480 = vpack.c.bf16 %v441, %v419
    %v481 = vpack.c.bf16 %v460, %v460
    %v482 = vpack.c.bf16 %v461, %v461
    %v483 = vpack.c.bf16 %v462, %v462
    %v484 = vpack.c.bf16 %v463, %v463
    %vm485 = vcmask 588800
    %v487 = vsel %vm485, %v464, 0
    %vm489 = vcmask 1043456
    %v491 = vsel %vm489, %v481, 0
    %v494 = vsel %vm489, %v482, 0
    %v497 = vsel %vm489, %v483, 0
    %v500 = vsel %vm489, %v484, 0
    %502 = vmatpush.bf16.msra.mxu0 0
    %503 = vmatpush.bf16.msra.mxu0 0
    %504 = vmatpush.bf16.msra.mxu0 0
    %505 = vmatpush.bf16.msra.mxu0 %v491
    %506 = vmatpush.bf16.msra.mxu0 %v477
    %507 = vmatpush.bf16.msra.mxu0 %v473
    %508 = vmatpush.bf16.msra.mxu0 %v469
    %509 = vmatpush.bf16.msra.mxu0 %v465
    %510 = vmatmul.bf16.gmra.mxu0 %v487
    %v511 = vpop.f32.mrf.mxu0
    %v512 = vadd.f32 0.0, %v511
    %v513 = vpop.f32.mrf.mxu0
    %514 = vdwg.mxu0
    %515 = vmatpush.bf16.msra.mxu0 0
    %516 = vmatpush.bf16.msra.mxu0 0
    %517 = vmatpush.bf16.msra.mxu0 0
    %518 = vmatpush.bf16.msra.mxu0 %v494
    %519 = vmatpush.bf16.msra.mxu0 %v478
    %520 = vmatpush.bf16.msra.mxu0 %v474
    %521 = vmatpush.bf16.msra.mxu0 %v470
    %522 = vmatpush.bf16.msra.mxu0 %v466
    %523 = vmatmul.bf16.gmra.mxu0 %v487
    %v524 = vpop.f32.mrf.mxu0
    %v525 = vadd.f32 0.0, %v524
    %v526 = vpop.f32.mrf.mxu0
    %527 = vdwg.mxu0
    %528 = vmatpush.bf16.msra.mxu0 0
    %529 = vmatpush.bf16.msra.mxu0 0
    %530 = vmatpush.bf16.msra.mxu0 0
    %531 = vmatpush.bf16.msra.mxu0 %v497
    %532 = vmatpush.bf16.msra.mxu0 %v479
    %533 = vmatpush.bf16.msra.mxu0 %v475
    %534 = vmatpush.bf16.msra.mxu0 %v471
    %535 = vmatpush.bf16.msra.mxu0 %v467
    %536 = vmatmul.bf16.gmra.mxu0 %v487
    %v537 = vpop.f32.mrf.mxu0
    %v538 = vadd.f32 0.0, %v537
    %v539 = vpop.f32.mrf.mxu0
    %540 = vdwg.mxu0
    %541 = vmatpush.bf16.msra.mxu0 0
    %542 = vmatpush.bf16.msra.mxu0 0
    %543 = vmatpush.bf16.msra.mxu0 0
    %544 = vmatpush.bf16.msra.mxu0 %v500
    %545 = vmatpush.bf16.msra.mxu0 %v480
    %546 = vmatpush.bf16.msra.mxu0 %v476
    %547 = vmatpush.bf16.msra.mxu0 %v472
    %548 = vmatpush.bf16.msra.mxu0 %v468
    %549 = vmatmul.bf16.gmra.mxu0 %v487
    %v550 = vpop.f32.mrf.mxu0
    %v551 = vadd.f32 0.0, %v550
    %v552 = vpop.f32.mrf.mxu0
    %553 = vdwg.mxu0
    %v554 = vld [vmem:[%s6] sm:$0xff]
    %v555 = vld [vmem:[%s7] sm:$0xff]
    %556 = vmatpush.msra.mxu0 1.0
    %557 = vmatpush.msra.mxu0 1.0
    %558 = vmatpush.msra.mxu0 1.0
    %559 = vmatpush.msra.mxu0 1.0
    %560 = vmatpush.msra.mxu0 1.0
    %561 = vmatpush.msra.mxu0 1.0
    %562 = vmatpush.msra.mxu0 1.0
    %563 = vmatpush.msra.mxu0 1.0
    %564 = vmatpush.msra.mxu0 1.0
    %565 = vmatpush.msra.mxu0 1.0
    %566 = vmatpush.msra.mxu0 1.0
    %567 = vmatpush.msra.mxu0 1.0
    %568 = vmatpush.msra.mxu0 1.0
    %569 = vmatpush.msra.mxu0 1.0
    %570 = vmatpush.msra.mxu0 1.0
    %571 = vmatpush.msra.mxu0 1.0
    %572 = vmatmul.f32.gmra.mxu0 %v512
    %v573 = vpop.f32.mrf.mxu0
    %v574 = vadd.f32 0.0, %v573
    %575 = vdwg.mxu0
    %576 = vmatpush.msra.mxu0 1.0
    %577 = vmatpush.msra.mxu0 1.0
    %578 = vmatpush.msra.mxu0 1.0
    %579 = vmatpush.msra.mxu0 1.0
    %580 = vmatpush.msra.mxu0 1.0
    %581 = vmatpush.msra.mxu0 1.0
    %582 = vmatpush.msra.mxu0 1.0
    %583 = vmatpush.msra.mxu0 1.0
    %584 = vmatpush.msra.mxu0 1.0
    %585 = vmatpush.msra.mxu0 1.0
    %586 = vmatpush.msra.mxu0 1.0
    %587 = vmatpush.msra.mxu0 1.0
    %588 = vmatpush.msra.mxu0 1.0
    %589 = vmatpush.msra.mxu0 1.0
    %590 = vmatpush.msra.mxu0 1.0
    %591 = vmatpush.msra.mxu0 1.0
    %592 = vmatmul.f32.gmra.mxu0 %v525
    %v593 = vpop.f32.mrf.mxu0
    %v594 = vadd.f32 %v574, %v593
    %595 = vdwg.mxu0
    %596 = vmatpush.msra.mxu0 1.0
    %597 = vmatpush.msra.mxu0 1.0
    %598 = vmatpush.msra.mxu0 1.0
    %599 = vmatpush.msra.mxu0 1.0
    %600 = vmatpush.msra.mxu0 1.0
    %601 = vmatpush.msra.mxu0 1.0
    %602 = vmatpush.msra.mxu0 1.0
    %603 = vmatpush.msra.mxu0 1.0
    %604 = vmatpush.msra.mxu0 1.0
    %605 = vmatpush.msra.mxu0 1.0
    %606 = vmatpush.msra.mxu0 1.0
    %607 = vmatpush.msra.mxu0 1.0
    %608 = vmatpush.msra.mxu0 1.0
    %609 = vmatpush.msra.mxu0 1.0
    %610 = vmatpush.msra.mxu0 1.0
    %611 = vmatpush.msra.mxu0 1.0
    %612 = vmatmul.f32.gmra.mxu0 %v538
    %v613 = vpop.f32.mrf.mxu0
    %v614 = vadd.f32 %v594, %v613
    %615 = vdwg.mxu0
    %616 = vmatpush.msra.mxu0 1.0
    %617 = vmatpush.msra.mxu0 1.0
    %618 = vmatpush.msra.mxu0 1.0
    %619 = vmatpush.msra.mxu0 1.0
    %620 = vmatpush.msra.mxu0 1.0
    %621 = vmatpush.msra.mxu0 1.0
    %622 = vmatpush.msra.mxu0 1.0
    %623 = vmatpush.msra.mxu0 1.0
    %624 = vmatpush.msra.mxu0 1.0
    %625 = vmatpush.msra.mxu0 1.0
    %626 = vmatpush.msra.mxu0 1.0
    %627 = vmatpush.msra.mxu0 1.0
    %628 = vmatpush.msra.mxu0 1.0
    %629 = vmatpush.msra.mxu0 1.0
    %630 = vmatpush.msra.mxu0 1.0
    %631 = vmatpush.msra.mxu0 1.0
    %632 = vmatmul.f32.gmra.mxu0 %v551
    %v633 = vpop.f32.mrf.mxu0
    %v634 = vadd.f32 %v614, %v633
    %635 = vdwg.mxu0
    %v636 = vmul.f32 %v512, %v512
    %v637 = vmul.f32 %v525, %v525
    %v638 = vmul.f32 %v538, %v538
    %v639 = vmul.f32 %v551, %v551
    %640 = vmatpush.msra.mxu0 1.0
    %641 = vmatpush.msra.mxu0 1.0
    %642 = vmatpush.msra.mxu0 1.0
    %643 = vmatpush.msra.mxu0 1.0
    %644 = vmatpush.msra.mxu0 1.0
    %645 = vmatpush.msra.mxu0 1.0
    %646 = vmatpush.msra.mxu0 1.0
    %647 = vmatpush.msra.mxu0 1.0
    %648 = vmatpush.msra.mxu0 1.0
    %649 = vmatpush.msra.mxu0 1.0
    %650 = vmatpush.msra.mxu0 1.0
    %651 = vmatpush.msra.mxu0 1.0
    %652 = vmatpush.msra.mxu0 1.0
    %653 = vmatpush.msra.mxu0 1.0
    %654 = vmatpush.msra.mxu0 1.0
    %655 = vmatpush.msra.mxu0 1.0
    %656 = vmatmul.f32.gmra.mxu0 %v636
    %v657 = vpop.f32.mrf.mxu0
    %v658 = vadd.f32 0.0, %v657
    %659 = vdwg.mxu0
    %660 = vmatpush.msra.mxu0 1.0
    %661 = vmatpush.msra.mxu0 1.0
    %662 = vmatpush.msra.mxu0 1.0
    %663 = vmatpush.msra.mxu0 1.0
    %664 = vmatpush.msra.mxu0 1.0
    %665 = vmatpush.msra.mxu0 1.0
    %666 = vmatpush.msra.mxu0 1.0
    %667 = vmatpush.msra.mxu0 1.0
    %668 = vmatpush.msra.mxu0 1.0
    %669 = vmatpush.msra.mxu0 1.0
    %670 = vmatpush.msra.mxu0 1.0
    %671 = vmatpush.msra.mxu0 1.0
    %672 = vmatpush.msra.mxu0 1.0
    %673 = vmatpush.msra.mxu0 1.0
    %674 = vmatpush.msra.mxu0 1.0
    %675 = vmatpush.msra.mxu0 1.0
    %676 = vmatmul.f32.gmra.mxu0 %v637
    %v677 = vpop.f32.mrf.mxu0
    %v678 = vadd.f32 %v658, %v677
    %679 = vdwg.mxu0
    %680 = vmatpush.msra.mxu0 1.0
    %681 = vmatpush.msra.mxu0 1.0
    %682 = vmatpush.msra.mxu0 1.0
    %683 = vmatpush.msra.mxu0 1.0
    %684 = vmatpush.msra.mxu0 1.0
    %685 = vmatpush.msra.mxu0 1.0
    %686 = vmatpush.msra.mxu0 1.0
    %687 = vmatpush.msra.mxu0 1.0
    %688 = vmatpush.msra.mxu0 1.0
    %689 = vmatpush.msra.mxu0 1.0
    %690 = vmatpush.msra.mxu0 1.0
    %691 = vmatpush.msra.mxu0 1.0
    %692 = vmatpush.msra.mxu0 1.0
    %693 = vmatpush.msra.mxu0 1.0
    %694 = vmatpush.msra.mxu0 1.0
    %695 = vmatpush.msra.mxu0 1.0
    %696 = vmatmul.f32.gmra.mxu0 %v638
    %v697 = vpop.f32.mrf.mxu0
    %v698 = vadd.f32 %v678, %v697
    %699 = vdwg.mxu0
    %700 = vmatpush.msra.mxu0 1.0
    %701 = vmatpush.msra.mxu0 1.0
    %702 = vmatpush.msra.mxu0 1.0
    %703 = vmatpush.msra.mxu0 1.0
    %704 = vmatpush.msra.mxu0 1.0
    %705 = vmatpush.msra.mxu0 1.0
    %706 = vmatpush.msra.mxu0 1.0
    %707 = vmatpush.msra.mxu0 1.0
    %708 = vmatpush.msra.mxu0 1.0
    %709 = vmatpush.msra.mxu0 1.0
    %710 = vmatpush.msra.mxu0 1.0
    %711 = vmatpush.msra.mxu0 1.0
    %712 = vmatpush.msra.mxu0 1.0
    %713 = vmatpush.msra.mxu0 1.0
    %714 = vmatpush.msra.mxu0 1.0
    %715 = vmatpush.msra.mxu0 1.0
    %716 = vmatmul.f32.gmra.mxu0 %v639
    %v717 = vpop.f32.mrf.mxu0
    %v718 = vadd.f32 %v698, %v717
    %719 = vdwg.mxu0
    %v720 = vmul.f32 %v634, 0.001953125
    %v721 = vmul.f32 %v718, 0.001953125
    %v722 = vmul.f32 %v720, %v720
    %v723 = vsub.f32 %v721, %v722
    %v724 = vmax.f32 %v723, 0.0
    %726 = vset.pattern.permute.xlu0 0
    %727 = vperm.xlu0 %726, %v720
    %v728 = vpop.permute.xlu0 %727
    %v730 = vsub.f32 %v512, %v728
    %v731 = vsub.f32 %v525, %v728
    %v732 = vsub.f32 %v538, %v728
    %v733 = vsub.f32 %v551, %v728
    %v734 = vadd.f32 %v724, 1e-05
    %v735 = vrsqrt.pop %v734
    %v736 = vmul.f32 %v735, %v734
    %v737 = vmul.f32 %v736, %v735
    %v738 = vmul.f32 0.5, %v737
    %v739 = vsub.f32 1.5, %v738
    %v740 = vmul.f32 %v735, %v739
    %vm741 = vweird.f32 %v734
    %vm742 = vweird.f32 %v735
    %vm743 = vmor %vm741, %vm742
    %v744 = vsel %vm743, %v735, %v740
    %746 = vset.pattern.permute.xlu0 0
    %747 = vperm.xlu0 %746, %v744
    %v748 = vpop.permute.xlu0 %747
    %v750 = vmul.f32 %v730, %v748
    %v751 = vmul.f32 %v731, %v748
    %v752 = vmul.f32 %v732, %v748
    %v753 = vmul.f32 %v733, %v748
    %755 = vset.pattern.permute.xlu0 0
    %756 = vperm.xlu0 %755, %v554
    %v757 = vpop.permute.xlu0 %756
    %v759 = vmul.f32 %v750, %v757
    %v760 = vmul.f32 %v751, %v757
    %v761 = vmul.f32 %v752, %v757
    %v762 = vmul.f32 %v753, %v757
    %764 = vset.pattern.permute.xlu0 0
    %765 = vperm.xlu0 %764, %v555
    %v766 = vpop.permute.xlu0 %765
    %v768 = vadd.f32 %v759, %v766
    %v769 = vadd.f32 %v760, %v766
    %v770 = vadd.f32 %v761, %v766
    %v771 = vadd.f32 %v762, %v766
    %v772 = vmax.f32 %v768, 0.0
    %v773 = vmax.f32 %v769, 0.0
    %v774 = vmax.f32 %v770, 0.0
    %v775 = vmax.f32 %v771, 0.0
    %776 = vrot.lane.b32.xlu0 %v772, 17
    %v777 = vpop.permute.xlu0 %776
    %778 = vrot.lane.b32.xlu0 %v773, 17
    %v779 = vpop.permute.xlu0 %778
    %780 = vrot.lane.b32.xlu0 %v774, 17
    %v781 = vpop.permute.xlu0 %780
    %782 = vrot.lane.b32.xlu0 %v775, 17
    %v783 = vpop.permute.xlu0 %782
    %v784 = vsel %vm297, %v781, %v783
    %v785 = vsel %vm297, %v779, %v781
    %v786 = vsel %vm297, %v777, %v779
    %v787 = vsel %vm297, %v783, %v777
    %v788 = vmul.f32 %v787, %v302
    %v789 = vmul.f32 %v786, %v303
    %v790 = vmul.f32 %v785, %v304
    %v791 = vmul.f32 %v784, %v305
    %792 = vrot.lane.b32.xlu0 %v772, 16
    %v793 = vpop.permute.xlu0 %792
    %794 = vrot.lane.b32.xlu0 %v773, 16
    %v795 = vpop.permute.xlu0 %794
    %796 = vrot.lane.b32.xlu0 %v774, 16
    %v797 = vpop.permute.xlu0 %796
    %798 = vrot.lane.b32.xlu0 %v775, 16
    %v799 = vpop.permute.xlu0 %798
    %v800 = vsel %vm318, %v797, %v799
    %v801 = vsel %vm318, %v795, %v797
    %v802 = vsel %vm318, %v793, %v795
    %v803 = vsel %vm318, %v799, %v793
    %v804 = vmul.f32 %v803, %v324
    %v805 = vmul.f32 %v802, %v325
    %v806 = vmul.f32 %v801, %v326
    %v807 = vmul.f32 %v800, %v327
    %808 = vrot.lane.b32.xlu0 %v772, 15
    %v809 = vpop.permute.xlu0 %808
    %810 = vrot.lane.b32.xlu0 %v773, 15
    %v811 = vpop.permute.xlu0 %810
    %812 = vrot.lane.b32.xlu0 %v774, 15
    %v813 = vpop.permute.xlu0 %812
    %814 = vrot.lane.b32.xlu0 %v775, 15
    %v815 = vpop.permute.xlu0 %814
    %v816 = vsel %vm340, %v813, %v815
    %v817 = vsel %vm340, %v811, %v813
    %v818 = vsel %vm340, %v809, %v811
    %v819 = vsel %vm340, %v815, %v809
    %v820 = vmul.f32 %v819, %v346
    %v821 = vmul.f32 %v818, %v347
    %v822 = vmul.f32 %v817, %v348
    %v823 = vmul.f32 %v816, %v349
    %824 = vrot.lane.b32.xlu0 %v772, 1
    %v825 = vpop.permute.xlu0 %824
    %826 = vrot.lane.b32.xlu0 %v773, 1
    %v827 = vpop.permute.xlu0 %826
    %828 = vrot.lane.b32.xlu0 %v774, 1
    %v829 = vpop.permute.xlu0 %828
    %830 = vrot.lane.b32.xlu0 %v775, 1
    %v831 = vpop.permute.xlu0 %830
    %v832 = vsel %vm362, %v829, %v831
    %v833 = vsel %vm362, %v827, %v829
    %v834 = vsel %vm362, %v825, %v827
    %v835 = vsel %vm362, %v831, %v825
    %v836 = vmul.f32 %v835, %v368
    %v837 = vmul.f32 %v834, %v369
    %v838 = vmul.f32 %v833, %v370
    %v839 = vmul.f32 %v832, %v371
    %840 = vrot.lane.b32.xlu0 %v772, 127
    %v841 = vpop.permute.xlu0 %840
    %842 = vrot.lane.b32.xlu0 %v773, 127
    %v843 = vpop.permute.xlu0 %842
    %844 = vrot.lane.b32.xlu0 %v774, 127
    %v845 = vpop.permute.xlu0 %844
    %846 = vrot.lane.b32.xlu0 %v775, 127
    %v847 = vpop.permute.xlu0 %846
    %v848 = vsel %vm384, %v845, %v847
    %v849 = vsel %vm384, %v843, %v845
    %v850 = vsel %vm384, %v841, %v843
    %v851 = vsel %vm384, %v847, %v841
    %v852 = vmul.f32 %v850, %v390
    %v853 = vmul.f32 %v849, %v391
    %v854 = vmul.f32 %v848, %v392
    %v855 = vmul.f32 %v851, %v393
    %856 = vrot.lane.b32.xlu0 %v772, 113
    %v857 = vpop.permute.xlu0 %856
    %858 = vrot.lane.b32.xlu0 %v773, 113
    %v859 = vpop.permute.xlu0 %858
    %860 = vrot.lane.b32.xlu0 %v774, 113
    %v861 = vpop.permute.xlu0 %860
    %862 = vrot.lane.b32.xlu0 %v775, 113
    %v863 = vpop.permute.xlu0 %862
    %v864 = vsel %vm406, %v861, %v863
    %v865 = vsel %vm406, %v859, %v861
    %v866 = vsel %vm406, %v857, %v859
    %v867 = vsel %vm406, %v863, %v857
    %v868 = vmul.f32 %v866, %v412
    %v869 = vmul.f32 %v865, %v413
    %v870 = vmul.f32 %v864, %v414
    %v871 = vmul.f32 %v867, %v415
    %872 = vrot.lane.b32.xlu0 %v772, 112
    %v873 = vpop.permute.xlu0 %872
    %874 = vrot.lane.b32.xlu0 %v773, 112
    %v875 = vpop.permute.xlu0 %874
    %876 = vrot.lane.b32.xlu0 %v774, 112
    %v877 = vpop.permute.xlu0 %876
    %878 = vrot.lane.b32.xlu0 %v775, 112
    %v879 = vpop.permute.xlu0 %878
    %v880 = vsel %vm428, %v877, %v879
    %v881 = vsel %vm428, %v875, %v877
    %v882 = vsel %vm428, %v873, %v875
    %v883 = vsel %vm428, %v879, %v873
    %v884 = vmul.f32 %v882, %v434
    %v885 = vmul.f32 %v881, %v435
    %v886 = vmul.f32 %v880, %v436
    %v887 = vmul.f32 %v883, %v437
    %888 = vrot.lane.b32.xlu0 %v772, 111
    %v889 = vpop.permute.xlu0 %888
    %890 = vrot.lane.b32.xlu0 %v773, 111
    %v891 = vpop.permute.xlu0 %890
    %892 = vrot.lane.b32.xlu0 %v774, 111
    %v893 = vpop.permute.xlu0 %892
    %894 = vrot.lane.b32.xlu0 %v775, 111
    %v895 = vpop.permute.xlu0 %894
    %v896 = vsel %vm450, %v893, %v895
    %v897 = vsel %vm450, %v891, %v893
    %v898 = vsel %vm450, %v889, %v891
    %v899 = vsel %vm450, %v895, %v889
    %v900 = vmul.f32 %v898, %v456
    %v901 = vmul.f32 %v897, %v457
    %v902 = vmul.f32 %v896, %v458
    %v903 = vmul.f32 %v899, %v459
    %v904 = vld [vmem:[#allocation5] sm:$0xf]
    %v905 = vpack.c.bf16 %v804, %v788
    %v906 = vpack.c.bf16 %v805, %v789
    %v907 = vpack.c.bf16 %v806, %v790
    %v908 = vpack.c.bf16 %v807, %v791
    %v909 = vpack.c.bf16 %v836, %v820
    %v910 = vpack.c.bf16 %v837, %v821
    %v911 = vpack.c.bf16 %v838, %v822
    %v912 = vpack.c.bf16 %v839, %v823
    %v913 = vpack.c.bf16 %v852, %v772
    %v914 = vpack.c.bf16 %v853, %v773
    %v915 = vpack.c.bf16 %v854, %v774
    %v916 = vpack.c.bf16 %v855, %v775
    %v917 = vpack.c.bf16 %v884, %v868
    %v918 = vpack.c.bf16 %v885, %v869
    %v919 = vpack.c.bf16 %v886, %v870
    %v920 = vpack.c.bf16 %v887, %v871
    %v921 = vpack.c.bf16 %v283, %v900
    %v922 = vpack.c.bf16 %v284, %v901
    %v923 = vpack.c.bf16 %v285, %v902
    %v924 = vpack.c.bf16 %v286, %v903
    %vm925 = vcmask 654336
    %v927 = vsel %vm925, %v904, 0
    %929 = vmatpush.bf16.msra.mxu0 0
    %930 = vmatpush.bf16.msra.mxu0 0
    %931 = vmatpush.bf16.msra.mxu0 0
    %932 = vmatpush.bf16.msra.mxu0 %v921
    %933 = vmatpush.bf16.msra.mxu0 %v917
    %934 = vmatpush.bf16.msra.mxu0 %v913
    %935 = vmatpush.bf16.msra.mxu0 %v909
    %936 = vmatpush.bf16.msra.mxu0 %v905
    %937 = vmatmul.bf16.gmra.mxu0 %v927
    %v938 = vpop.f32.mrf.mxu0
    %v939 = vadd.f32 0.0, %v938
    %v940 = vpop.f32.mrf.mxu0
    %941 = vdwg.mxu0
    %942 = vmatpush.bf16.msra.mxu0 0
    %943 = vmatpush.bf16.msra.mxu0 0
    %944 = vmatpush.bf16.msra.mxu0 0
    %945 = vmatpush.bf16.msra.mxu0 %v922
    %946 = vmatpush.bf16.msra.mxu0 %v918
    %947 = vmatpush.bf16.msra.mxu0 %v914
    %948 = vmatpush.bf16.msra.mxu0 %v910
    %949 = vmatpush.bf16.msra.mxu0 %v906
    %950 = vmatmul.bf16.gmra.mxu0 %v927
    %v951 = vpop.f32.mrf.mxu0
    %v952 = vadd.f32 0.0, %v951
    %v953 = vpop.f32.mrf.mxu0
    %954 = vdwg.mxu0
    %955 = vmatpush.bf16.msra.mxu0 0
    %956 = vmatpush.bf16.msra.mxu0 0
    %957 = vmatpush.bf16.msra.mxu0 0
    %958 = vmatpush.bf16.msra.mxu0 %v923
    %959 = vmatpush.bf16.msra.mxu0 %v919
    %960 = vmatpush.bf16.msra.mxu0 %v915
    %961 = vmatpush.bf16.msra.mxu0 %v911
    %962 = vmatpush.bf16.msra.mxu0 %v907
    %963 = vmatmul.bf16.gmra.mxu0 %v927
    %v964 = vpop.f32.mrf.mxu0
    %v965 = vadd.f32 0.0, %v964
    %v966 = vpop.f32.mrf.mxu0
    %967 = vdwg.mxu0
    %968 = vmatpush.bf16.msra.mxu0 0
    %969 = vmatpush.bf16.msra.mxu0 0
    %970 = vmatpush.bf16.msra.mxu0 0
    %971 = vmatpush.bf16.msra.mxu0 %v924
    %972 = vmatpush.bf16.msra.mxu0 %v920
    %973 = vmatpush.bf16.msra.mxu0 %v916
    %974 = vmatpush.bf16.msra.mxu0 %v912
    %975 = vmatpush.bf16.msra.mxu0 %v908
    %976 = vmatmul.bf16.gmra.mxu0 %v927
    %v977 = vpop.f32.mrf.mxu0
    %v978 = vadd.f32 0.0, %v977
    %v979 = vpop.f32.mrf.mxu0
    %980 = vdwg.mxu0
    %981 = vst [vmem:[#allocation7] sm:$0xff] %v939
    %982 = vst [vmem:[#allocation7 + $0x8] sm:$0xff] %v952
    %983 = vst [vmem:[#allocation7 + $0x10] sm:$0xff] %v965
    %984 = vst [vmem:[#allocation7 + $0x18] sm:$0xff] %v978
    // Predicated region
    $region42: #{tpu_custom_call.1} parent=1 // pred_check
      _
    $region43: #{tpu_custom_call.1} parent=1 // pred_check_branch
      %986 = sbr.rel (0) target = $region45
    $region44: #{tpu_custom_call.1} parent=1 // pred_region
      %988 = vsyncadd [#allocation4], 0
      %s990 = sshll.u32 [#allocation7], 4
      %s991 = int_to_ptr.vmem [resolvable:$true] %s990
      %s992 = sshll.u32 %s8, 4
      %s993 = int_to_ptr.hbm [resolvable:$true] %s992
      %995 = dma.vmem_to_hbm [thread:$0]  %s991, 512, %s993, [#allocation4]
    $region45: #{tpu_custom_call.1} parent=1 // pred_fallthru
      _
    // Predicated region
    $region46: #{tpu_custom_call.1} parent=1 // pred_check
      _
    $region47: #{tpu_custom_call.1} parent=1 // pred_check_branch
      %997 = sbr.rel (0) target = $region49
    $region48: #{tpu_custom_call.1} parent=1 // pred_region
      %999 = dma.done [#allocation4], 512
    $region49: #{tpu_custom_call.1} parent=1 // pred_fallthru
      _
    %1000 = vsyncpa [#allocation3], 1
    %1001 = vsyncpa [#allocation6], 1
    %1002 = vsyncpa [#allocation4], 1

</llo_original>
